<compile_context>
chip_gen: v5e
topology: v5e:2x2
jax: 0.10.0
libtpu: 0.0.40
codegen_flags: <defaults>
</compile_context>

<pallas_src>
import functools

import jax
import jax.numpy as jnp
from jax.experimental import pallas as pl
from jax.experimental.pallas import tpu as pltpu

# Packed parameter layout: 29 f32 scalars, PyTorch (out, in) row-major order.
_OFF = {"w1": 0, "b1": 12, "w2": 14, "b2": 18, "w3": 20, "b3": 24, "w4": 26, "b4": 28}
_N_PARAMS = 29


def _mlp_kernel(p_ref, x_ref, o_ref):
    """p_ref: (29,) f32 in SMEM; x_ref: (6, T) f32 tile; o_ref: (1, T) f32 tile."""

    def sigmoid(v):
        # exact sigmoid via one EUP transcendental (tanh) instead of exp+add+divide
        return 0.5 * jnp.tanh(0.5 * v) + 0.5

    def linear(rows, w_off, b_off, n_in, n_out):
        # y_j = b_j + sum_i w[j, i] * rows[i]  -- unrolled VPU broadcast multiply-adds
        outs = []
        for j in range(n_out):
            acc = p_ref[b_off + j] + p_ref[w_off + j * n_in] * rows[0]
            for i in range(1, n_in):
                acc = acc + p_ref[w_off + j * n_in + i] * rows[i]
            outs.append(acc)
        return outs

    rows = [x_ref[i:i + 1, :] for i in range(6)]              # six (1, T) lane-dense rows
    h = [sigmoid(v) for v in linear(rows, _OFF["w1"], _OFF["b1"], 6, 2)]
    h = [sigmoid(v) for v in linear(h, _OFF["w2"], _OFF["b2"], 2, 2)]
    h = [sigmoid(v) for v in linear(h, _OFF["w3"], _OFF["b3"], 2, 2)]
    o = linear(h, _OFF["w4"], _OFF["b4"], 2, 1)[0]            # (1, T), no activation
    o_ref[...] = o.astype(o_ref.dtype)


def pack_params(params):
    """Flatten PyTorch-shaped params (w: (out,in), b: (out,)) into one f32 vector."""
    parts = [params[k].reshape(-1).astype(jnp.float32)
             for k in ("w1", "b1", "w2", "b2", "w3", "b3", "w4", "b4")]
    packed = jnp.concatenate(parts)
    assert packed.shape == (_N_PARAMS,)
    return packed


def _round_up(n, m):
    return ((n + m - 1) // m) * m


@functools.partial(jax.jit, static_argnames=("batch_tile",))
def bpnn_dnn_forward(x, params, *, batch_tile=8192):
    """x: (B, 6) float32, params: PyTorch-shaped dict. Returns (B, 1) float32."""
    B, F = x.shape
    assert F == 6
    assert batch_tile % 128 == 0, "batch_tile must be a multiple of 128 lanes"

    tile = min(batch_tile, _round_up(B, 128))
    padded_B = _round_up(B, tile)
    grid = (padded_B // tile,)

    # Feature-major layout: batch occupies the (fast) lane dimension.
    xt = jnp.pad(x.T.astype(jnp.float32), ((0, 0), (0, padded_B - B)))
    packed = pack_params(params)

    # Advisory: kernel is purely HBM-bound (~28 B, ~70 flops, 6 transcendentals per row).
    cost = pl.CostEstimate(flops=70 * padded_B,
                           transcendentals=6 * padded_B,
                           bytes_accessed=28 * padded_B + 4 * _N_PARAMS)

    out = pl.pallas_call(
        _mlp_kernel,
        out_shape=jax.ShapeDtypeStruct((1, padded_B), jnp.float32),
        grid_spec=pltpu.PrefetchScalarGridSpec(
            num_scalar_prefetch=0,
            grid=grid,
            in_specs=[
                # all 29 weights/biases in one SMEM block (no per-array padded VMEM blocks)
                pl.BlockSpec(memory_space=pltpu.MemorySpace.SMEM),
                # lane-dense (6, tile) input slab
                pl.BlockSpec((6, tile), lambda i: (0, i)),
            ],
            out_specs=pl.BlockSpec((1, tile), lambda i: (0, i)),
        ),
        compiler_params=pltpu.CompilerParams(
            dimension_semantics=("parallel",)),
        cost_estimate=cost,
    )(packed, xt)

    return out[0, :B].reshape(B, 1)


def init_params(key):
    """Deterministic synthetic params matching torch.nn.Linear shapes: w (out,in), b (out,)."""
    ks = jax.random.split(key, 8)

    def lin(kw, kb, fin, fout):
        bound = 1.0 / (fin ** 0.5)
        w = jax.random.uniform(kw, (fout, fin), jnp.float32, -bound, bound)
        b = jax.random.uniform(kb, (fout,), jnp.float32, -bound, bound)
        return w, b

    w1, b1 = lin(ks[0], ks[1], 6, 2)
    w2, b2 = lin(ks[2], ks[3], 2, 2)
    w3, b3 = lin(ks[4], ks[5], 2, 2)
    w4, b4 = lin(ks[6], ks[7], 2, 1)
    return {"w1": w1, "b1": b1, "w2": w2, "b2": b2,
            "w3": w3, "b3": b3, "w4": w4, "b4": b4}


def _reference(x, p):
    sig = jax.nn.sigmoid
    h = sig(x @ p["w1"].T + p["b1"])
    h = sig(h @ p["w2"].T + p["b2"])
    h = sig(h @ p["w3"].T + p["b3"])
    return h @ p["w4"].T + p["b4"]


if __name__ == "__main__":
    key = jax.random.PRNGKey(0)
    kx, kp = jax.random.split(key)
    B = 8
    x = jax.random.normal(kx, (B, 6), dtype=jnp.float32)
    params = init_params(kp)

    out = bpnn_dnn_forward(x, params)
    out = jax.block_until_ready(out)

    ref = _reference(x, params)
    assert out.shape == (B, 1)
    assert jnp.allclose(out, ref, atol=1e-4, rtol=1e-4), \
        f"max abs err = {float(jnp.max(jnp.abs(out - ref)))}"
    print("KERNEL_OK")
</pallas_src>

<mosaic_0001>
module attributes {stable_mosaic.version = 11 : i64} {
  func.func @_mlp_kernel(%arg0: i32, %arg1: memref<29xf32, #tpu.memory_space<smem>>, %arg2: memref<6x128xf32, #tpu.memory_space<vmem>>, %arg3: memref<1x128xf32, #tpu.memory_space<vmem>>) attributes {dimension_semantics = [#tpu.dimension_semantics<parallel>], iteration_bounds = array<i64: 1>, scalar_prefetch = 0 : i64, scratch_operands = 0 : i64, tpu.core_type = #tpu.core_type<tc>, window_params = [{transform_indices = @transform_0, window_bounds = array<i64: 29>}, {transform_indices = @transform_1, window_bounds = array<i64: 6, 128>}, {transform_indices = @transform_2, window_bounds = array<i64: 1, 128>}]} {
    %c0 = arith.constant 0 : index
    %c0_0 = arith.constant 0 : index
    %0 = vector.load %arg2[%c0, %c0_0] : memref<6x128xf32, #tpu.memory_space<vmem>>, vector<1x128xf32>
    %c1 = arith.constant 1 : index
    %c0_1 = arith.constant 0 : index
    %1 = vector.load %arg2[%c1, %c0_1] : memref<6x128xf32, #tpu.memory_space<vmem>>, vector<1x128xf32>
    %c2 = arith.constant 2 : index
    %c0_2 = arith.constant 0 : index
    %2 = vector.load %arg2[%c2, %c0_2] : memref<6x128xf32, #tpu.memory_space<vmem>>, vector<1x128xf32>
    %c3 = arith.constant 3 : index
    %c0_3 = arith.constant 0 : index
    %3 = vector.load %arg2[%c3, %c0_3] : memref<6x128xf32, #tpu.memory_space<vmem>>, vector<1x128xf32>
    %c4 = arith.constant 4 : index
    %c0_4 = arith.constant 0 : index
    %4 = vector.load %arg2[%c4, %c0_4] : memref<6x128xf32, #tpu.memory_space<vmem>>, vector<1x128xf32>
    %c5 = arith.constant 5 : index
    %c0_5 = arith.constant 0 : index
    %5 = vector.load %arg2[%c5, %c0_5] : memref<6x128xf32, #tpu.memory_space<vmem>>, vector<1x128xf32>
    %c12 = arith.constant 12 : index
    %6 = memref.load %arg1[%c12] : memref<29xf32, #tpu.memory_space<smem>>
    %c0_6 = arith.constant 0 : index
    %7 = memref.load %arg1[%c0_6] : memref<29xf32, #tpu.memory_space<smem>>
    %8 = vector.broadcast %7 : f32 to vector<1x128xf32>
    %9 = arith.mulf %8, %0 : vector<1x128xf32>
    %10 = vector.broadcast %6 : f32 to vector<1x128xf32>
    %11 = arith.addf %10, %9 : vector<1x128xf32>
    %c1_7 = arith.constant 1 : index
    %12 = memref.load %arg1[%c1_7] : memref<29xf32, #tpu.memory_space<smem>>
    %13 = vector.broadcast %12 : f32 to vector<1x128xf32>
    %14 = arith.mulf %13, %1 : vector<1x128xf32>
    %15 = arith.addf %11, %14 : vector<1x128xf32>
    %c2_8 = arith.constant 2 : index
    %16 = memref.load %arg1[%c2_8] : memref<29xf32, #tpu.memory_space<smem>>
    %17 = vector.broadcast %16 : f32 to vector<1x128xf32>
    %18 = arith.mulf %17, %2 : vector<1x128xf32>
    %19 = arith.addf %15, %18 : vector<1x128xf32>
    %c3_9 = arith.constant 3 : index
    %20 = memref.load %arg1[%c3_9] : memref<29xf32, #tpu.memory_space<smem>>
    %21 = vector.broadcast %20 : f32 to vector<1x128xf32>
    %22 = arith.mulf %21, %3 : vector<1x128xf32>
    %23 = arith.addf %19, %22 : vector<1x128xf32>
    %c4_10 = arith.constant 4 : index
    %24 = memref.load %arg1[%c4_10] : memref<29xf32, #tpu.memory_space<smem>>
    %25 = vector.broadcast %24 : f32 to vector<1x128xf32>
    %26 = arith.mulf %25, %4 : vector<1x128xf32>
    %27 = arith.addf %23, %26 : vector<1x128xf32>
    %c5_11 = arith.constant 5 : index
    %28 = memref.load %arg1[%c5_11] : memref<29xf32, #tpu.memory_space<smem>>
    %29 = vector.broadcast %28 : f32 to vector<1x128xf32>
    %30 = arith.mulf %29, %5 : vector<1x128xf32>
    %31 = arith.addf %27, %30 : vector<1x128xf32>
    %c13 = arith.constant 13 : index
    %32 = memref.load %arg1[%c13] : memref<29xf32, #tpu.memory_space<smem>>
    %c6 = arith.constant 6 : index
    %33 = memref.load %arg1[%c6] : memref<29xf32, #tpu.memory_space<smem>>
    %34 = vector.broadcast %33 : f32 to vector<1x128xf32>
    %35 = arith.mulf %34, %0 : vector<1x128xf32>
    %36 = vector.broadcast %32 : f32 to vector<1x128xf32>
    %37 = arith.addf %36, %35 : vector<1x128xf32>
    %c7 = arith.constant 7 : index
    %38 = memref.load %arg1[%c7] : memref<29xf32, #tpu.memory_space<smem>>
    %39 = vector.broadcast %38 : f32 to vector<1x128xf32>
    %40 = arith.mulf %39, %1 : vector<1x128xf32>
    %41 = arith.addf %37, %40 : vector<1x128xf32>
    %c8 = arith.constant 8 : index
    %42 = memref.load %arg1[%c8] : memref<29xf32, #tpu.memory_space<smem>>
    %43 = vector.broadcast %42 : f32 to vector<1x128xf32>
    %44 = arith.mulf %43, %2 : vector<1x128xf32>
    %45 = arith.addf %41, %44 : vector<1x128xf32>
    %c9 = arith.constant 9 : index
    %46 = memref.load %arg1[%c9] : memref<29xf32, #tpu.memory_space<smem>>
    %47 = vector.broadcast %46 : f32 to vector<1x128xf32>
    %48 = arith.mulf %47, %3 : vector<1x128xf32>
    %49 = arith.addf %45, %48 : vector<1x128xf32>
    %c10 = arith.constant 10 : index
    %50 = memref.load %arg1[%c10] : memref<29xf32, #tpu.memory_space<smem>>
    %51 = vector.broadcast %50 : f32 to vector<1x128xf32>
    %52 = arith.mulf %51, %4 : vector<1x128xf32>
    %53 = arith.addf %49, %52 : vector<1x128xf32>
    %c11 = arith.constant 11 : index
    %54 = memref.load %arg1[%c11] : memref<29xf32, #tpu.memory_space<smem>>
    %55 = vector.broadcast %54 : f32 to vector<1x128xf32>
    %56 = arith.mulf %55, %5 : vector<1x128xf32>
    %57 = arith.addf %53, %56 : vector<1x128xf32>
    %cst = arith.constant 5.000000e-01 : f32
    %58 = vector.broadcast %cst : f32 to vector<1x128xf32>
    %59 = arith.mulf %58, %31 : vector<1x128xf32>
    %60 = math.tanh %59 : vector<1x128xf32>
    %cst_12 = arith.constant 5.000000e-01 : f32
    %61 = vector.broadcast %cst_12 : f32 to vector<1x128xf32>
    %62 = arith.mulf %61, %60 : vector<1x128xf32>
    %cst_13 = arith.constant 5.000000e-01 : f32
    %63 = vector.broadcast %cst_13 : f32 to vector<1x128xf32>
    %64 = arith.addf %62, %63 : vector<1x128xf32>
    %cst_14 = arith.constant 5.000000e-01 : f32
    %65 = vector.broadcast %cst_14 : f32 to vector<1x128xf32>
    %66 = arith.mulf %65, %57 : vector<1x128xf32>
    %67 = math.tanh %66 : vector<1x128xf32>
    %cst_15 = arith.constant 5.000000e-01 : f32
    %68 = vector.broadcast %cst_15 : f32 to vector<1x128xf32>
    %69 = arith.mulf %68, %67 : vector<1x128xf32>
    %cst_16 = arith.constant 5.000000e-01 : f32
    %70 = vector.broadcast %cst_16 : f32 to vector<1x128xf32>
    %71 = arith.addf %69, %70 : vector<1x128xf32>
    %c18 = arith.constant 18 : index
    %72 = memref.load %arg1[%c18] : memref<29xf32, #tpu.memory_space<smem>>
    %c14 = arith.constant 14 : index
    %73 = memref.load %arg1[%c14] : memref<29xf32, #tpu.memory_space<smem>>
    %74 = vector.broadcast %73 : f32 to vector<1x128xf32>
    %75 = arith.mulf %74, %64 : vector<1x128xf32>
    %76 = vector.broadcast %72 : f32 to vector<1x128xf32>
    %77 = arith.addf %76, %75 : vector<1x128xf32>
    %c15 = arith.constant 15 : index
    %78 = memref.load %arg1[%c15] : memref<29xf32, #tpu.memory_space<smem>>
    %79 = vector.broadcast %78 : f32 to vector<1x128xf32>
    %80 = arith.mulf %79, %71 : vector<1x128xf32>
    %81 = arith.addf %77, %80 : vector<1x128xf32>
    %c19 = arith.constant 19 : index
    %82 = memref.load %arg1[%c19] : memref<29xf32, #tpu.memory_space<smem>>
    %c16 = arith.constant 16 : index
    %83 = memref.load %arg1[%c16] : memref<29xf32, #tpu.memory_space<smem>>
    %84 = vector.broadcast %83 : f32 to vector<1x128xf32>
    %85 = arith.mulf %84, %64 : vector<1x128xf32>
    %86 = vector.broadcast %82 : f32 to vector<1x128xf32>
    %87 = arith.addf %86, %85 : vector<1x128xf32>
    %c17 = arith.constant 17 : index
    %88 = memref.load %arg1[%c17] : memref<29xf32, #tpu.memory_space<smem>>
    %89 = vector.broadcast %88 : f32 to vector<1x128xf32>
    %90 = arith.mulf %89, %71 : vector<1x128xf32>
    %91 = arith.addf %87, %90 : vector<1x128xf32>
    %cst_17 = arith.constant 5.000000e-01 : f32
    %92 = vector.broadcast %cst_17 : f32 to vector<1x128xf32>
    %93 = arith.mulf %92, %81 : vector<1x128xf32>
    %94 = math.tanh %93 : vector<1x128xf32>
    %cst_18 = arith.constant 5.000000e-01 : f32
    %95 = vector.broadcast %cst_18 : f32 to vector<1x128xf32>
    %96 = arith.mulf %95, %94 : vector<1x128xf32>
    %cst_19 = arith.constant 5.000000e-01 : f32
    %97 = vector.broadcast %cst_19 : f32 to vector<1x128xf32>
    %98 = arith.addf %96, %97 : vector<1x128xf32>
    %cst_20 = arith.constant 5.000000e-01 : f32
    %99 = vector.broadcast %cst_20 : f32 to vector<1x128xf32>
    %100 = arith.mulf %99, %91 : vector<1x128xf32>
    %101 = math.tanh %100 : vector<1x128xf32>
    %cst_21 = arith.constant 5.000000e-01 : f32
    %102 = vector.broadcast %cst_21 : f32 to vector<1x128xf32>
    %103 = arith.mulf %102, %101 : vector<1x128xf32>
    %cst_22 = arith.constant 5.000000e-01 : f32
    %104 = vector.broadcast %cst_22 : f32 to vector<1x128xf32>
    %105 = arith.addf %103, %104 : vector<1x128xf32>
    %c24 = arith.constant 24 : index
    %106 = memref.load %arg1[%c24] : memref<29xf32, #tpu.memory_space<smem>>
    %c20 = arith.constant 20 : index
    %107 = memref.load %arg1[%c20] : memref<29xf32, #tpu.memory_space<smem>>
    %108 = vector.broadcast %107 : f32 to vector<1x128xf32>
    %109 = arith.mulf %108, %98 : vector<1x128xf32>
    %110 = vector.broadcast %106 : f32 to vector<1x128xf32>
    %111 = arith.addf %110, %109 : vector<1x128xf32>
    %c21 = arith.constant 21 : index
    %112 = memref.load %arg1[%c21] : memref<29xf32, #tpu.memory_space<smem>>
    %113 = vector.broadcast %112 : f32 to vector<1x128xf32>
    %114 = arith.mulf %113, %105 : vector<1x128xf32>
    %115 = arith.addf %111, %114 : vector<1x128xf32>
    %c25 = arith.constant 25 : index
    %116 = memref.load %arg1[%c25] : memref<29xf32, #tpu.memory_space<smem>>
    %c22 = arith.constant 22 : index
    %117 = memref.load %arg1[%c22] : memref<29xf32, #tpu.memory_space<smem>>
    %118 = vector.broadcast %117 : f32 to vector<1x128xf32>
    %119 = arith.mulf %118, %98 : vector<1x128xf32>
    %120 = vector.broadcast %116 : f32 to vector<1x128xf32>
    %121 = arith.addf %120, %119 : vector<1x128xf32>
    %c23 = arith.constant 23 : index
    %122 = memref.load %arg1[%c23] : memref<29xf32, #tpu.memory_space<smem>>
    %123 = vector.broadcast %122 : f32 to vector<1x128xf32>
    %124 = arith.mulf %123, %105 : vector<1x128xf32>
    %125 = arith.addf %121, %124 : vector<1x128xf32>
    %cst_23 = arith.constant 5.000000e-01 : f32
    %126 = vector.broadcast %cst_23 : f32 to vector<1x128xf32>
    %127 = arith.mulf %126, %115 : vector<1x128xf32>
    %128 = math.tanh %127 : vector<1x128xf32>
    %cst_24 = arith.constant 5.000000e-01 : f32
    %129 = vector.broadcast %cst_24 : f32 to vector<1x128xf32>
    %130 = arith.mulf %129, %128 : vector<1x128xf32>
    %cst_25 = arith.constant 5.000000e-01 : f32
    %131 = vector.broadcast %cst_25 : f32 to vector<1x128xf32>
    %132 = arith.addf %130, %131 : vector<1x128xf32>
    %cst_26 = arith.constant 5.000000e-01 : f32
    %133 = vector.broadcast %cst_26 : f32 to vector<1x128xf32>
    %134 = arith.mulf %133, %125 : vector<1x128xf32>
    %135 = math.tanh %134 : vector<1x128xf32>
    %cst_27 = arith.constant 5.000000e-01 : f32
    %136 = vector.broadcast %cst_27 : f32 to vector<1x128xf32>
    %137 = arith.mulf %136, %135 : vector<1x128xf32>
    %cst_28 = arith.constant 5.000000e-01 : f32
    %138 = vector.broadcast %cst_28 : f32 to vector<1x128xf32>
    %139 = arith.addf %137, %138 : vector<1x128xf32>
    %c28 = arith.constant 28 : index
    %140 = memref.load %arg1[%c28] : memref<29xf32, #tpu.memory_space<smem>>
    %c26 = arith.constant 26 : index
    %141 = memref.load %arg1[%c26] : memref<29xf32, #tpu.memory_space<smem>>
    %142 = vector.broadcast %141 : f32 to vector<1x128xf32>
    %143 = arith.mulf %142, %132 : vector<1x128xf32>
    %144 = vector.broadcast %140 : f32 to vector<1x128xf32>
    %145 = arith.addf %144, %143 : vector<1x128xf32>
    %c27 = arith.constant 27 : index
    %146 = memref.load %arg1[%c27] : memref<29xf32, #tpu.memory_space<smem>>
    %147 = vector.broadcast %146 : f32 to vector<1x128xf32>
    %148 = arith.mulf %147, %139 : vector<1x128xf32>
    %149 = arith.addf %145, %148 : vector<1x128xf32>
    %c0_29 = arith.constant 0 : index
    %c0_30 = arith.constant 0 : index
    %150 = vector.load %arg3[%c0_29, %c0_30] : memref<1x128xf32, #tpu.memory_space<vmem>>, vector<1x128xf32>
    tpu.vector_store %arg3[%c0_29, %c0_30], %149 {strides = array<i32>} : memref<1x128xf32, #tpu.memory_space<vmem>>, vector<1x128xf32>,
    return
  }
  func.func @transform_0(%arg0: i32) -> i32 {
    %c0_i32 = arith.constant 0 : i32
    %c0_i32_0 = arith.constant 0 : i32
    return %c0_i32 : i32
  }
  func.func @transform_1(%arg0: i32) -> (i32, i32) {
    %c0_i32 = arith.constant 0 : i32
    %c0_i32_0 = arith.constant 0 : i32
    return %c0_i32, %arg0 : i32, i32
  }
  func.func @transform_2(%arg0: i32) -> (i32, i32) {
    %c0_i32 = arith.constant 0 : i32
    %c0_i32_0 = arith.constant 0 : i32
    return %c0_i32, %arg0 : i32, i32
  }
}

</mosaic_0001>

<llo_original>
// kernel: bpnn_dnn_forward.1
$region0: #{bpnn_dnn_forward.1}
  #allocation0 [shape = 'u32[]', space=smem, size = 0x4, offset = 0x4, fixed_abs, tag = 'smem constant byte address 0x4 - core index']
  #allocation1 [shape = 'u32[72,128]{1,0:T(1,128)}', space=vmem, size = 0x9000, scoped, tag = 'internal scratch']
  %s0 = inlined_call_operand.vmem [shape: f32[29], index: 0, kind: input, shape index: {}]
  %s1 = inlined_call_operand.vmem [shape: f32[6,128], index: 1, kind: input, shape index: {}]
  %s2 = inlined_call_operand.vmem [shape: f32[1,128], index: 2, kind: output, shape index: {}]
  %s3 = sld [smem:[#allocation0]]
  $region22: #{bpnn_dnn_forward.1} parent=0
    _
  %s5 = ssub.s32 1, %s3
  %s6 = scalar_select 0, %s5, %s3
  $region1: #{bpnn_dnn_forward.1} parent=0
    #allocation2 [shape = 'u8[512]{0}', space=smem, size = 0x200, scoped, tag = 'input window, operand 0, single buffered']
    #allocation3 [shape = 's32[1]{0}', space=sflag, size = 0x4, scoped, tag = 'scoped memory for bpnn_dnn_forward.1']
    %7 = vsyncpa [#allocation3], 0
    // Predicated region
    $region2: #{bpnn_dnn_forward.1} parent=1 // pred_check
      _
    $region3: #{bpnn_dnn_forward.1} parent=1 // pred_check_branch
      %9 = sbr.rel (0) target = $region5
    $region4: #{bpnn_dnn_forward.1} parent=1 // pred_region
      %11 = vsyncadd [#allocation3], 0
      %s13 = sshll.u32 %s0, 4
      %s14 = int_to_ptr.vmem [resolvable:$true] %s13
      %16 = dma.vmem_to_smem %s14, 16, [#allocation2], [#allocation3]
    $region5: #{bpnn_dnn_forward.1} parent=1 // pred_fallthru
      _
    // Predicated region
    $region6: #{bpnn_dnn_forward.1} parent=1 // pred_check
      _
    $region7: #{bpnn_dnn_forward.1} parent=1 // pred_check_branch
      %18 = sbr.rel (0) target = $region9
    $region8: #{bpnn_dnn_forward.1} parent=1 // pred_region
      _
    $region9: #{bpnn_dnn_forward.1} parent=1 // pred_fallthru
      _
    // Predicated region
    $region10: #{bpnn_dnn_forward.1} parent=1 // pred_check
      _
    $region11: #{bpnn_dnn_forward.1} parent=1 // pred_check_branch
      %20 = sbr.rel (0) target = $region13
    $region12: #{bpnn_dnn_forward.1} parent=1 // pred_region
      %22 = dma.done [#allocation3], 16
    $region13: #{bpnn_dnn_forward.1} parent=1 // pred_fallthru
      _
    %23 = sfence
    %v24 = vld [vmem:[%s1] sm:$0x1]
    %v25 = vld [vmem:[%s1 + $0x1] sm:$0x1]
    %v26 = vld [vmem:[%s1 + $0x2] sm:$0x1]
    %v27 = vld [vmem:[%s1 + $0x3] sm:$0x1]
    %v28 = vld [vmem:[%s1 + $0x4] sm:$0x1]
    %v29 = vld [vmem:[%s1 + $0x5] sm:$0x1]
    %s30 = sld [smem:[#allocation2 + $0xc]]
    %s31 = sld [smem:[#allocation2]]
    %v32 = vstv %s31
    %v33 = vmul.f32 %v32, %v24
    %v34 = vstv %s30
    %v35 = vadd.f32 %v34, %v33
    %s36 = sld [smem:[#allocation2 + $0x1]]
    %v37 = vstv %s36
    %v38 = vmul.f32 %v37, %v25
    %v39 = vadd.f32 %v35, %v38
    %s40 = sld [smem:[#allocation2 + $0x2]]
    %v41 = vstv %s40
    %v42 = vmul.f32 %v41, %v26
    %v43 = vadd.f32 %v39, %v42
    %s44 = sld [smem:[#allocation2 + $0x3]]
    %v45 = vstv %s44
    %v46 = vmul.f32 %v45, %v27
    %v47 = vadd.f32 %v43, %v46
    %s48 = sld [smem:[#allocation2 + $0x4]]
    %v49 = vstv %s48
    %v50 = vmul.f32 %v49, %v28
    %v51 = vadd.f32 %v47, %v50
    %s52 = sld [smem:[#allocation2 + $0x5]]
    %v53 = vstv %s52
    %v54 = vmul.f32 %v53, %v29
    %v55 = vadd.f32 %v51, %v54
    %s56 = sld [smem:[#allocation2 + $0xd]]
    %s57 = sld [smem:[#allocation2 + $0x6]]
    %v58 = vstv %s57
    %v59 = vmul.f32 %v58, %v24
    %v60 = vstv %s56
    %v61 = vadd.f32 %v60, %v59
    %s62 = sld [smem:[#allocation2 + $0x7]]
    %v63 = vstv %s62
    %v64 = vmul.f32 %v63, %v25
    %v65 = vadd.f32 %v61, %v64
    %s66 = sld [smem:[#allocation2 + $0x8]]
    %v67 = vstv %s66
    %v68 = vmul.f32 %v67, %v26
    %v69 = vadd.f32 %v65, %v68
    %s70 = sld [smem:[#allocation2 + $0x9]]
    %v71 = vstv %s70
    %v72 = vmul.f32 %v71, %v27
    %v73 = vadd.f32 %v69, %v72
    %s74 = sld [smem:[#allocation2 + $0xa]]
    %v75 = vstv %s74
    %v76 = vmul.f32 %v75, %v28
    %v77 = vadd.f32 %v73, %v76
    %s78 = sld [smem:[#allocation2 + $0xb]]
    %v79 = vstv %s78
    %v80 = vmul.f32 %v79, %v29
    %v81 = vadd.f32 %v77, %v80
    %v82 = vmul.f32 %v55, 0.5
    %v83 = vtanh.pop %v82
    %v84 = vmul.f32 %v83, 0.5
    %v85 = vadd.f32 %v84, 0.5
    %v86 = vmul.f32 %v81, 0.5
    %v87 = vtanh.pop %v86
    %v88 = vmul.f32 %v87, 0.5
    %v89 = vadd.f32 %v88, 0.5
    %s90 = sld [smem:[#allocation2 + $0x12]]
    %s91 = sld [smem:[#allocation2 + $0xe]]
    %v92 = vstv %s91
    %v93 = vmul.f32 %v92, %v85
    %v94 = vstv %s90
    %v95 = vadd.f32 %v94, %v93
    %s96 = sld [smem:[#allocation2 + $0xf]]
    %v97 = vstv %s96
    %v98 = vmul.f32 %v97, %v89
    %v99 = vadd.f32 %v95, %v98
    %s100 = sld [smem:[#allocation2 + $0x13]]
    %s101 = sld [smem:[#allocation2 + $0x10]]
    %v102 = vstv %s101
    %v103 = vmul.f32 %v102, %v85
    %v104 = vstv %s100
    %v105 = vadd.f32 %v104, %v103
    %s106 = sld [smem:[#allocation2 + $0x11]]
    %v107 = vstv %s106
    %v108 = vmul.f32 %v107, %v89
    %v109 = vadd.f32 %v105, %v108
    %v110 = vmul.f32 %v99, 0.5
    %v111 = vtanh.pop %v110
    %v112 = vmul.f32 %v111, 0.5
    %v113 = vadd.f32 %v112, 0.5
    %v114 = vmul.f32 %v109, 0.5
    %v115 = vtanh.pop %v114
    %v116 = vmul.f32 %v115, 0.5
    %v117 = vadd.f32 %v116, 0.5
    %s118 = sld [smem:[#allocation2 + $0x18]]
    %s119 = sld [smem:[#allocation2 + $0x14]]
    %v120 = vstv %s119
    %v121 = vmul.f32 %v120, %v113
    %v122 = vstv %s118
    %v123 = vadd.f32 %v122, %v121
    %s124 = sld [smem:[#allocation2 + $0x15]]
    %v125 = vstv %s124
    %v126 = vmul.f32 %v125, %v117
    %v127 = vadd.f32 %v123, %v126
    %s128 = sld [smem:[#allocation2 + $0x19]]
    %s129 = sld [smem:[#allocation2 + $0x16]]
    %v130 = vstv %s129
    %v131 = vmul.f32 %v130, %v113
    %v132 = vstv %s128
    %v133 = vadd.f32 %v132, %v131
    %s134 = sld [smem:[#allocation2 + $0x17]]
    %v135 = vstv %s134
    %v136 = vmul.f32 %v135, %v117
    %v137 = vadd.f32 %v133, %v136
    %v138 = vmul.f32 %v127, 0.5
    %v139 = vtanh.pop %v138
    %v140 = vmul.f32 %v139, 0.5
    %v141 = vadd.f32 %v140, 0.5
    %v142 = vmul.f32 %v137, 0.5
    %v143 = vtanh.pop %v142
    %v144 = vmul.f32 %v143, 0.5
    %v145 = vadd.f32 %v144, 0.5
    %s146 = sld [smem:[#allocation2 + $0x1c]]
    %s147 = sld [smem:[#allocation2 + $0x1a]]
    %v148 = vstv %s147
    %v149 = vmul.f32 %v148, %v141
    %v150 = vstv %s146
    %v151 = vadd.f32 %v150, %v149
    %s152 = sld [smem:[#allocation2 + $0x1b]]
    %v153 = vstv %s152
    %v154 = vmul.f32 %v153, %v145
    %v155 = vadd.f32 %v151, %v154
    %156 = vst [vmem:[%s2] sm:$0x1] %v155
    // Predicated region
    $region14: #{bpnn_dnn_forward.1} parent=1 // pred_check
      _
    $region15: #{bpnn_dnn_forward.1} parent=1 // pred_check_branch
      %158 = sbr.rel (0) target = $region17
    $region16: #{bpnn_dnn_forward.1} parent=1 // pred_region
      _
    $region17: #{bpnn_dnn_forward.1} parent=1 // pred_fallthru
      _
    // Predicated region
    $region18: #{bpnn_dnn_forward.1} parent=1 // pred_check
      _
    $region19: #{bpnn_dnn_forward.1} parent=1 // pred_check_branch
      %160 = sbr.rel (0) target = $region21
    $region20: #{bpnn_dnn_forward.1} parent=1 // pred_region
      _
    $region21: #{bpnn_dnn_forward.1} parent=1 // pred_fallthru
      _
    %161 = vsyncpa [#allocation3], 1

</llo_original>
